<compile_context>
chip_gen: v7x
topology: tpu7x:2x2x1
jax: 0.10.0
libtpu: 0.0.40
codegen_flags: <defaults>
</compile_context>

<pallas_src>
import math
from functools import partial

import jax
import jax.numpy as jnp
from jax.experimental import pallas as pl
from jax.experimental.pallas import tpu as pltpu


# --------------------------------------------------------------------------
# Pallas kernel: one batch tile, full S-reduction, lane-packed batch
# --------------------------------------------------------------------------
def _agcn_kernel(poly_ref, x_ref, w_ref, b_ref, out_ref, xg_ref):
    """out = concat_s(T_s @ X) @ W_blockdiag + bias  for one lane-packed batch tile.

    poly_ref: (S, N, N)         resident Chebyshev stack (compute dtype)
    x_ref:    (N, TB*Ci)        streamed lane-packed batch tile (compute dtype)
    w_ref:    (S*TB*Ci, TB*Co)  resident block-diagonal weight (compute dtype)
    b_ref:    (1, TB*Co)        resident bias (f32), tiled across the batch tile
    out_ref:  (N, TB*Co)        lane-dense output tile
    xg_ref:   (N, S*TB*Ci)      VMEM scratch: concatenated propagation result
    """
    S = poly_ref.shape[0]
    k = x_ref.shape[-1]                      # TB*Ci (multiple of 128)
    x = x_ref[...]

    # Graph propagation: S matmuls (N,N)@(N,TB*Ci) on the MXU, f32 accumulation,
    # results written side by side into the VMEM scratch (128-aligned slices).
    for s in range(S):                       # S is small & static -> fully unrolled
        xs = jnp.dot(poly_ref[s], x, preferred_element_type=jnp.float32)
        xg_ref[:, s * k:(s + 1) * k] = xs.astype(xg_ref.dtype)

    # Projection: ONE long-K matmul (N, S*TB*Ci) @ (S*TB*Ci, TB*Co) -> (N, TB*Co)
    acc = jnp.dot(xg_ref[...], w_ref[...], preferred_element_type=jnp.float32)

    # f32 bias epilogue + single lane-dense store.
    out_ref[...] = (acc + b_ref[...]).astype(out_ref.dtype)


# --------------------------------------------------------------------------
# Helpers
# --------------------------------------------------------------------------
def _cheb_stack(supports, cheb_k):
    """supports: (num_supports, N, N) -> stacked polynomials (num_supports*K, N, N)."""
    num_s, n, _ = supports.shape
    eye = jnp.eye(n, dtype=supports.dtype)
    polys = []
    for si in range(num_s):
        a = supports[si]
        ks = [eye, a]
        for _ in range(2, cheb_k):
            ks.append(
                2.0 * jnp.dot(a, ks[-1], precision=jax.lax.Precision.HIGHEST) - ks[-2]
            )
        polys.extend(ks)
    return jnp.stack(polys, axis=0)


def _pick_tile_batch(batch, dim_in, dim_out, lane_target=256, lane_cap=512):
    """Batch-tile size TB such that TB*Ci and TB*Co are multiples of 128 and the
    packed lane width is pushed toward `lane_target` without overshooting B."""
    def unit(c):
        return 128 // math.gcd(128, c)

    u_in, u_out = unit(dim_in), unit(dim_out)
    g = u_in * u_out // math.gcd(u_in, u_out)       # lcm of the two constraints
    tb = g
    while tb * dim_in < lane_target and tb < batch and (tb + g) * dim_in <= lane_cap * 2:
        tb += g
    return tb


# --------------------------------------------------------------------------
# Wrapper: Chebyshev stack (tiny, sequential) + pallas_call
# --------------------------------------------------------------------------
@partial(jax.jit, static_argnames=("cheb_k", "compute_dtype"))
def agcn_forward(x, supports, weights, bias, cheb_k, compute_dtype=jnp.bfloat16):
    """x: (B, N, Ci); supports: (num_supports, N, N); weights: (S*Ci, Co); bias: (Co,)."""
    B, N, Ci = x.shape
    Co = weights.shape[-1]

    polys = _cheb_stack(supports, cheb_k)            # (S, N, N), f32
    S = polys.shape[0]
    assert weights.shape[0] == S * Ci, "weight rows must equal num_supports*cheb_k*dim_in"

    TB = _pick_tile_batch(B, Ci, Co)
    num_tiles = -(-B // TB)
    B_pad = num_tiles * TB

    # Pack the batch into the lane dimension: (B, N, Ci) -> (N, B_pad*Ci).
    x_p = jnp.pad(x, ((0, B_pad - B), (0, 0), (0, 0)))
    x_p = jnp.transpose(x_p, (1, 0, 2)).reshape(N, B_pad * Ci).astype(compute_dtype)

    # Block-diagonal weight over the TB packed batches, flattened over S:
    #   w_bd[s*TB*Ci + t*Ci + i, u*Co + o] = (t == u) * W[s*Ci + i, o]
    w_r = weights.reshape(S, Ci, Co)
    eye_tb = jnp.eye(TB, dtype=weights.dtype)
    w_bd = jnp.einsum("tu,sio->stiuo", eye_tb, w_r).reshape(S * TB * Ci, TB * Co)
    w_bd = w_bd.astype(compute_dtype)

    b_tiled = jnp.tile(bias, TB).reshape(1, TB * Co).astype(jnp.float32)
    polys_c = polys.astype(compute_dtype)

    out_packed = pl.pallas_call(
        _agcn_kernel,
        out_shape=jax.ShapeDtypeStruct((N, B_pad * Co), x.dtype),
        grid_spec=pltpu.PrefetchScalarGridSpec(
            num_scalar_prefetch=0,
            grid=(num_tiles,),                                        # batch tiles only
            in_specs=[
                pl.BlockSpec((S, N, N), lambda i: (0, 0, 0)),          # resident polys
                pl.BlockSpec((N, TB * Ci), lambda i: (0, i)),          # streamed x tile
                pl.BlockSpec((S * TB * Ci, TB * Co), lambda i: (0, 0)),  # resident W
                pl.BlockSpec((1, TB * Co), lambda i: (0, 0)),          # resident bias
            ],
            out_specs=pl.BlockSpec((N, TB * Co), lambda i: (0, i)),    # lane-dense out
            scratch_shapes=[pltpu.VMEM((N, S * TB * Ci), compute_dtype)],
        ),
        compiler_params=pltpu.CompilerParams(
            dimension_semantics=("parallel",),                         # megacore-splittable
        ),
    )(polys_c, x_p, w_bd, b_tiled)

    # Unpack lanes back to (B, N, Co).
    out = out_packed.reshape(N, B_pad, Co).transpose(1, 0, 2)[:B]
    return out


class AGCN:
    """JAX/Pallas port of src/model/MegaCRN.py::AGCN (assumes 2 supports, as in the spec)."""

    def __init__(self, dim_in, dim_out, cheb_k, *, key):
        self.cheb_k = cheb_k
        fan_in, fan_out = 2 * cheb_k * dim_in, dim_out
        std = math.sqrt(2.0 / (fan_in + fan_out))      # xavier normal (gain=1)
        self.weights = std * jax.random.normal(key, (fan_in, fan_out), jnp.float32)
        self.bias = jnp.zeros((dim_out,), jnp.float32)

    def __call__(self, x, supports, compute_dtype=jnp.bfloat16):
        supports = jnp.stack(list(supports), axis=0)
        return agcn_forward(x, supports, self.weights, self.bias, self.cheb_k,
                            compute_dtype=compute_dtype)


# --------------------------------------------------------------------------
# Pure-JAX reference (mirrors the torch module) + test
# --------------------------------------------------------------------------
def agcn_reference(x, supports_list, weights, bias, cheb_k):
    support_set = []
    for support in supports_list:
        n = support.shape[0]
        ks = [jnp.eye(n, dtype=support.dtype), support]
        for _ in range(2, cheb_k):
            ks.append(
                2.0 * jnp.dot(support, ks[-1], precision=jax.lax.Precision.HIGHEST)
                - ks[-2]
            )
        support_set.extend(ks)
    x_g = [
        jnp.einsum("nm,bmc->bnc", s, x, precision=jax.lax.Precision.HIGHEST)
        for s in support_set
    ]
    x_g = jnp.concatenate(x_g, axis=-1)
    return (
        jnp.einsum("bni,io->bno", x_g, weights, precision=jax.lax.Precision.HIGHEST)
        + bias
    )


if __name__ == "__main__":
    key = jax.random.PRNGKey(0)
    kx, ks1, ks2, kw, kb = jax.random.split(key, 5)

    # small MegaCRN-like shapes: batch=2, nodes=16, dim_in=32, dim_out=32, cheb_k=3
    B, N, Ci, Co, cheb_k = 2, 16, 32, 32, 3
    x = jax.random.normal(kx, (B, N, Ci), dtype=jnp.float32)
    # row-stochastic random supports (MegaCRN uses softmax'd adaptive adjacencies)
    s1 = jax.nn.softmax(jax.random.normal(ks1, (N, N), dtype=jnp.float32), axis=-1)
    s2 = jax.nn.softmax(jax.random.normal(ks2, (N, N), dtype=jnp.float32), axis=-1)
    supports = [s1, s2]

    model = AGCN(Ci, Co, cheb_k, key=kw)
    # exercise the bias path (module init is zeros, which would trivially pass)
    model.bias = 0.1 * jax.random.normal(kb, (Co,), dtype=jnp.float32)

    ref = agcn_reference(x, supports, model.weights, model.bias, cheb_k)

    # strict structural-correctness check with f32 MXU operands
    out_f32 = jax.block_until_ready(model(x, supports, compute_dtype=jnp.float32))
    ok_f32 = bool(jnp.allclose(out_f32, ref, atol=1e-3, rtol=1e-3))

    # performance path: bf16 MXU operands, f32 accumulation (looser tolerance)
    out_bf16 = jax.block_until_ready(model(x, supports))
    ok_bf16 = bool(jnp.allclose(out_bf16, ref, atol=3e-2, rtol=3e-2))

    if ok_f32 and ok_bf16:
        print("KERNEL_OK")
    else:
        err_f32 = float(jnp.max(jnp.abs(out_f32 - ref)))
        err_bf16 = float(jnp.max(jnp.abs(out_bf16 - ref)))
        raise SystemExit(
            f"mismatch vs reference: f32 max abs err {err_f32:e} (ok={ok_f32}), "
            f"bf16 max abs err {err_bf16:e} (ok={ok_bf16})"
        )
</pallas_src>

<mosaic_0001>
module attributes {stable_mosaic.version = 11 : i64} {
  func.func @_agcn_kernel(%arg0: i32, %arg1: memref<6x16x16xf32, #tpu.memory_space<vmem>>, %arg2: memref<16x128xf32, #tpu.memory_space<vmem>>, %arg3: memref<768x128xf32, #tpu.memory_space<vmem>>, %arg4: memref<1x128xf32, #tpu.memory_space<vmem>>, %arg5: memref<16x128xf32, #tpu.memory_space<vmem>>, %arg6: memref<16x768xf32, #tpu.memory_space<vmem>>) attributes {dimension_semantics = [#tpu.dimension_semantics<parallel>], iteration_bounds = array<i64: 1>, scalar_prefetch = 0 : i64, scratch_operands = 1 : i64, tpu.core_type = #tpu.core_type<tc>, window_params = [{pipeline_mode = #tpu.pipeline_mode<synchronous>, transform_indices = @transform_0, window_bounds = array<i64: 6, 16, 16>}, {transform_indices = @transform_1, window_bounds = array<i64: 16, 128>}, {pipeline_mode = #tpu.pipeline_mode<synchronous>, transform_indices = @transform_2, window_bounds = array<i64: 768, 128>}, {pipeline_mode = #tpu.pipeline_mode<synchronous>, transform_indices = @transform_3, window_bounds = array<i64: 1, 128>}, {transform_indices = @transform_4, window_bounds = array<i64: 16, 128>}]} {
    %c0 = arith.constant 0 : index
    %c0_0 = arith.constant 0 : index
    %0 = vector.load %arg2[%c0, %c0_0] : memref<16x128xf32, #tpu.memory_space<vmem>>, vector<16x128xf32>
    %c0_1 = arith.constant 0 : index
    %c0_2 = arith.constant 0 : index
    %c0_3 = arith.constant 0 : index
    %1 = vector.load %arg1[%c0_1, %c0_2, %c0_3] : memref<6x16x16xf32, #tpu.memory_space<vmem>>, vector<1x16x16xf32>
    %2 = vector.shape_cast %1 : vector<1x16x16xf32> to vector<16x16xf32>
    %cst = arith.constant dense<0.000000e+00> : vector<16x128xf32>
    %3 = tpu.matmul %2, %0, %cst {dimension_numbers = #tpu.dot_dimension_numbers<[1], [0], [0], [1], [0, 0, 1, 1], [], []>} : vector<16x16xf32>, vector<16x128xf32>, vector<16x128xf32> -> vector<16x128xf32>
    %c0_4 = arith.constant 0 : index
    %c0_5 = arith.constant 0 : index
    %4 = vector.load %arg6[%c0_4, %c0_5] : memref<16x768xf32, #tpu.memory_space<vmem>>, vector<16x128xf32>
    tpu.vector_store %arg6[%c0_4, %c0_5], %3 {strides = array<i32>} : memref<16x768xf32, #tpu.memory_space<vmem>>, vector<16x128xf32>,
    %c1 = arith.constant 1 : index
    %c0_6 = arith.constant 0 : index
    %c0_7 = arith.constant 0 : index
    %5 = vector.load %arg1[%c1, %c0_6, %c0_7] : memref<6x16x16xf32, #tpu.memory_space<vmem>>, vector<1x16x16xf32>
    %6 = vector.shape_cast %5 : vector<1x16x16xf32> to vector<16x16xf32>
    %cst_8 = arith.constant dense<0.000000e+00> : vector<16x128xf32>
    %7 = tpu.matmul %6, %0, %cst_8 {dimension_numbers = #tpu.dot_dimension_numbers<[1], [0], [0], [1], [0, 0, 1, 1], [], []>} : vector<16x16xf32>, vector<16x128xf32>, vector<16x128xf32> -> vector<16x128xf32>
    %c0_9 = arith.constant 0 : index
    %c128 = arith.constant 128 : index
    %8 = vector.load %arg6[%c0_9, %c128] : memref<16x768xf32, #tpu.memory_space<vmem>>, vector<16x128xf32>
    tpu.vector_store %arg6[%c0_9, %c128], %7 {strides = array<i32>} : memref<16x768xf32, #tpu.memory_space<vmem>>, vector<16x128xf32>,
    %c2 = arith.constant 2 : index
    %c0_10 = arith.constant 0 : index
    %c0_11 = arith.constant 0 : index
    %9 = vector.load %arg1[%c2, %c0_10, %c0_11] : memref<6x16x16xf32, #tpu.memory_space<vmem>>, vector<1x16x16xf32>
    %10 = vector.shape_cast %9 : vector<1x16x16xf32> to vector<16x16xf32>
    %cst_12 = arith.constant dense<0.000000e+00> : vector<16x128xf32>
    %11 = tpu.matmul %10, %0, %cst_12 {dimension_numbers = #tpu.dot_dimension_numbers<[1], [0], [0], [1], [0, 0, 1, 1], [], []>} : vector<16x16xf32>, vector<16x128xf32>, vector<16x128xf32> -> vector<16x128xf32>
    %c0_13 = arith.constant 0 : index
    %c256 = arith.constant 256 : index
    %12 = vector.load %arg6[%c0_13, %c256] : memref<16x768xf32, #tpu.memory_space<vmem>>, vector<16x128xf32>
    tpu.vector_store %arg6[%c0_13, %c256], %11 {strides = array<i32>} : memref<16x768xf32, #tpu.memory_space<vmem>>, vector<16x128xf32>,
    %c3 = arith.constant 3 : index
    %c0_14 = arith.constant 0 : index
    %c0_15 = arith.constant 0 : index
    %13 = vector.load %arg1[%c3, %c0_14, %c0_15] : memref<6x16x16xf32, #tpu.memory_space<vmem>>, vector<1x16x16xf32>
    %14 = vector.shape_cast %13 : vector<1x16x16xf32> to vector<16x16xf32>
    %cst_16 = arith.constant dense<0.000000e+00> : vector<16x128xf32>
    %15 = tpu.matmul %14, %0, %cst_16 {dimension_numbers = #tpu.dot_dimension_numbers<[1], [0], [0], [1], [0, 0, 1, 1], [], []>} : vector<16x16xf32>, vector<16x128xf32>, vector<16x128xf32> -> vector<16x128xf32>
    %c0_17 = arith.constant 0 : index
    %c384 = arith.constant 384 : index
    %16 = vector.load %arg6[%c0_17, %c384] : memref<16x768xf32, #tpu.memory_space<vmem>>, vector<16x128xf32>
    tpu.vector_store %arg6[%c0_17, %c384], %15 {strides = array<i32>} : memref<16x768xf32, #tpu.memory_space<vmem>>, vector<16x128xf32>,
    %c4 = arith.constant 4 : index
    %c0_18 = arith.constant 0 : index
    %c0_19 = arith.constant 0 : index
    %17 = vector.load %arg1[%c4, %c0_18, %c0_19] : memref<6x16x16xf32, #tpu.memory_space<vmem>>, vector<1x16x16xf32>
    %18 = vector.shape_cast %17 : vector<1x16x16xf32> to vector<16x16xf32>
    %cst_20 = arith.constant dense<0.000000e+00> : vector<16x128xf32>
    %19 = tpu.matmul %18, %0, %cst_20 {dimension_numbers = #tpu.dot_dimension_numbers<[1], [0], [0], [1], [0, 0, 1, 1], [], []>} : vector<16x16xf32>, vector<16x128xf32>, vector<16x128xf32> -> vector<16x128xf32>
    %c0_21 = arith.constant 0 : index
    %c512 = arith.constant 512 : index
    %20 = vector.load %arg6[%c0_21, %c512] : memref<16x768xf32, #tpu.memory_space<vmem>>, vector<16x128xf32>
    tpu.vector_store %arg6[%c0_21, %c512], %19 {strides = array<i32>} : memref<16x768xf32, #tpu.memory_space<vmem>>, vector<16x128xf32>,
    %c5 = arith.constant 5 : index
    %c0_22 = arith.constant 0 : index
    %c0_23 = arith.constant 0 : index
    %21 = vector.load %arg1[%c5, %c0_22, %c0_23] : memref<6x16x16xf32, #tpu.memory_space<vmem>>, vector<1x16x16xf32>
    %22 = vector.shape_cast %21 : vector<1x16x16xf32> to vector<16x16xf32>
    %cst_24 = arith.constant dense<0.000000e+00> : vector<16x128xf32>
    %23 = tpu.matmul %22, %0, %cst_24 {dimension_numbers = #tpu.dot_dimension_numbers<[1], [0], [0], [1], [0, 0, 1, 1], [], []>} : vector<16x16xf32>, vector<16x128xf32>, vector<16x128xf32> -> vector<16x128xf32>
    %c0_25 = arith.constant 0 : index
    %c640 = arith.constant 640 : index
    %24 = vector.load %arg6[%c0_25, %c640] : memref<16x768xf32, #tpu.memory_space<vmem>>, vector<16x128xf32>
    tpu.vector_store %arg6[%c0_25, %c640], %23 {strides = array<i32>} : memref<16x768xf32, #tpu.memory_space<vmem>>, vector<16x128xf32>,
    %c0_26 = arith.constant 0 : index
    %c0_27 = arith.constant 0 : index
    %25 = vector.load %arg6[%c0_26, %c0_27] : memref<16x768xf32, #tpu.memory_space<vmem>>, vector<16x768xf32>
    %c0_28 = arith.constant 0 : index
    %c0_29 = arith.constant 0 : index
    %26 = vector.load %arg3[%c0_28, %c0_29] : memref<768x128xf32, #tpu.memory_space<vmem>>, vector<768x128xf32>
    %cst_30 = arith.constant dense<0.000000e+00> : vector<16x128xf32>
    %27 = tpu.matmul %25, %26, %cst_30 {dimension_numbers = #tpu.dot_dimension_numbers<[1], [0], [0], [1], [0, 0, 1, 1], [], []>} : vector<16x768xf32>, vector<768x128xf32>, vector<16x128xf32> -> vector<16x128xf32>
    %c0_31 = arith.constant 0 : index
    %c0_32 = arith.constant 0 : index
    %28 = vector.load %arg4[%c0_31, %c0_32] : memref<1x128xf32, #tpu.memory_space<vmem>>, vector<1x128xf32>
    %29 = vector.broadcast %28 : vector<1x128xf32> to vector<16x128xf32>
    %30 = arith.addf %27, %29 : vector<16x128xf32>
    %c0_33 = arith.constant 0 : index
    %c0_34 = arith.constant 0 : index
    %31 = vector.load %arg5[%c0_33, %c0_34] : memref<16x128xf32, #tpu.memory_space<vmem>>, vector<16x128xf32>
    tpu.vector_store %arg5[%c0_33, %c0_34], %30 {strides = array<i32>} : memref<16x128xf32, #tpu.memory_space<vmem>>, vector<16x128xf32>,
    return
  }
  func.func @transform_0(%arg0: i32) -> (i32, i32, i32) {
    %c0_i32 = arith.constant 0 : i32
    %c0_i32_0 = arith.constant 0 : i32
    %c0_i32_1 = arith.constant 0 : i32
    %c0_i32_2 = arith.constant 0 : i32
    return %c0_i32, %c0_i32_0, %c0_i32_1 : i32, i32, i32
  }
  func.func @transform_1(%arg0: i32) -> (i32, i32) {
    %c0_i32 = arith.constant 0 : i32
    %c0_i32_0 = arith.constant 0 : i32
    return %c0_i32, %arg0 : i32, i32
  }
  func.func @transform_2(%arg0: i32) -> (i32, i32) {
    %c0_i32 = arith.constant 0 : i32
    %c0_i32_0 = arith.constant 0 : i32
    %c0_i32_1 = arith.constant 0 : i32
    return %c0_i32, %c0_i32_0 : i32, i32
  }
  func.func @transform_3(%arg0: i32) -> (i32, i32) {
    %c0_i32 = arith.constant 0 : i32
    %c0_i32_0 = arith.constant 0 : i32
    %c0_i32_1 = arith.constant 0 : i32
    return %c0_i32, %c0_i32_0 : i32, i32
  }
  func.func @transform_4(%arg0: i32) -> (i32, i32) {
    %c0_i32 = arith.constant 0 : i32
    %c0_i32_0 = arith.constant 0 : i32
    return %c0_i32, %arg0 : i32, i32
  }
}

</mosaic_0001>

<llo_original>
// kernel: tile.8
$region0: #{tile.8}
  #allocation0 [shape = 's32[1]{0}', space=sflag, size = 0x4, scoped, tag = 'scoped memory for tile.8']
  %s0 = inlined_call_operand.vmem [shape: f32[32], index: 0, kind: input, shape index: {}]
  %s1 = inlined_call_operand.vmem [shape: f32[4,32], index: 1, kind: output, shape index: {}]
  // Predicated region
  $region2: #{tile.8} parent=0 // pred_check
    _
  $region3: #{tile.8} parent=0 // pred_check_branch
    %3 = sbr.rel (0) target = $region5
  $region4: #{tile.8} parent=0 // pred_region
    _
  $region5: #{tile.8} parent=0 // pred_fallthru
    _
  %v4 = vld [vmem:[%s0] ss:$0 sm:$0xff]
  %5 = vst [vmem:[%s1] sm:$0xf] %v4

// kernel: tile.9
$region0: #{tile.9}
  %s0 = inlined_call_operand.vmem [shape: f32[4,32], index: 0, kind: input, shape index: {}]
  %s1 = inlined_call_operand.vmem [shape: f32[1,128], index: 1, kind: output, shape index: {}]
  $region1: #{tile.9} parent=0
    #allocation0 [shape = 'u8[4096]{0}', space=vmem, size = 0x1000, scoped, tag = 'scoped mem for output reshape']
    #allocation1 [shape = 'u8[4096]{0}', space=vmem, size = 0x1000, scoped, tag = 'scoped mem for input reshape']
    %s3 = sshllo.u32 0, 4
    %v4 = vld [vmem:[%s0] sm:%s3]
    %5 = vst [vmem:[#allocation1] sm:%s3] %v4
    %v6 = vld [vmem:[#allocation1] sm:$0x1]
    %vm7 = vcmask 261120
    %8 = vst.msk [vmem:[#allocation0] sm:$0x1] %vm7, %v6
    %s9 = scalar_lea.vmem [#allocation1], 3
    %v10 = vld [vmem:[%s9] sm:$0x1]
    %11 = vrot.lane.b32.xlu0 %v10, 96
    %v12 = vpop.permute.xlu0 %11
    %vm13 = vcmask 1048320
    %14 = vst.msk [vmem:[#allocation0] sm:$0x1] %vm13, %v12
    %s15 = scalar_lea.vmem [#allocation1], 2
    %v16 = vld [vmem:[%s15] sm:$0x1]
    %17 = vrot.lane.b32.xlu0 %v16, 64
    %v18 = vpop.permute.xlu0 %17
    %vm19 = vcmask 785920
    %20 = vst.msk [vmem:[#allocation0] sm:$0x1] %vm19, %v18
    %s21 = scalar_lea.vmem [#allocation1], 1
    %v22 = vld [vmem:[%s21] sm:$0x1]
    %23 = vrot.lane.b32.xlu0 %v22, 32
    %v24 = vpop.permute.xlu0 %23
    %vm25 = vcmask 523520
    %26 = vst.msk [vmem:[#allocation0] sm:$0x1] %vm25, %v24
    %s28 = sshllo.u32 0, 1
    %v30 = vld [vmem:[#allocation0] sm:%s28]
    %s31 = sshllo.u32 0, 1
    %32 = vst [vmem:[%s1] sm:%s31] %v30

// kernel: agcn_forward.1
$region0: #{agcn_forward.1}
  #allocation0 [shape = 'u32[]', space=smem, size = 0x4, offset = 0x4, fixed_abs, tag = 'smem constant byte address 0x4 - core index']
  #allocation1 [shape = 'u32[144,128]{1,0:T(1,128)}', space=vmem, size = 0x12000, scoped, tag = 'internal scratch']
  #allocation2 [shape = 'f32[16,768]{1,0:T(8,128)}', space=vmem, size = 0xc000, scoped, tag = 'scratch operand']
  %s0 = inlined_call_operand.vmem [shape: f32[6,16,16], index: 0, kind: input, shape index: {}]
  %s1 = inlined_call_operand.vmem [shape: f32[16,128], index: 1, kind: input, shape index: {}]
  %s2 = inlined_call_operand.vmem [shape: f32[768,128], index: 2, kind: input, shape index: {}]
  %s3 = inlined_call_operand.vmem [shape: f32[1,128], index: 3, kind: input, shape index: {}]
  %s4 = inlined_call_operand.vmem [shape: f32[16,128], index: 4, kind: output, shape index: {}]
  %s5 = sld [smem:[#allocation0]]
  $region26: #{agcn_forward.1} parent=0
    _
  %s7 = ssub.s32 1, %s5
  %s8 = scalar_select 0, %s7, %s5
  // Predicated region
  $region2: #{agcn_forward.1} parent=0 // pred_check
    _
  $region3: #{agcn_forward.1} parent=0 // pred_check_branch
    %10 = sbr.rel (0) target = $region5
  $region4: #{agcn_forward.1} parent=0 // pred_region
    _
  $region5: #{agcn_forward.1} parent=0 // pred_fallthru
    _
  // Predicated region
  $region6: #{agcn_forward.1} parent=0 // pred_check
    _
  $region7: #{agcn_forward.1} parent=0 // pred_check_branch
    %12 = sbr.rel (0) target = $region9
  $region8: #{agcn_forward.1} parent=0 // pred_region
    _
  $region9: #{agcn_forward.1} parent=0 // pred_fallthru
    _
  // Predicated region
  $region10: #{agcn_forward.1} parent=0 // pred_check
    _
  $region11: #{agcn_forward.1} parent=0 // pred_check_branch
    %14 = sbr.rel (0) target = $region13
  $region12: #{agcn_forward.1} parent=0 // pred_region
    _
  $region13: #{agcn_forward.1} parent=0 // pred_fallthru
    _
  // Predicated region
  $region14: #{agcn_forward.1} parent=0 // pred_check
    _
  $region15: #{agcn_forward.1} parent=0 // pred_check_branch
    %16 = sbr.rel (0) target = $region17
  $region16: #{agcn_forward.1} parent=0 // pred_region
    _
  $region17: #{agcn_forward.1} parent=0 // pred_fallthru
    _
  %v17 = vld [vmem:[%s1] sm:$0xff]
  %v18 = vld [vmem:[%s1 + $0x8] sm:$0xff]
  %v19 = vld [vmem:[%s0] sm:$0xff]
  %v20 = vld [vmem:[%s0 + $0x8] sm:$0xff]
  %vm21 = vcmask 130048
  %v23 = vsel %vm21, %v19, 0
  %v26 = vsel %vm21, %v20, 0
  %28 = vmatprep.subr.mxu0 0.0
  %29 = vmatpush1.msra.mxu0 %v17
  %30 = vmatprep.subr.mxu0 0.0
  %31 = vmatpush1.msra.mxu0 %v18
  %32 = vmatprep.subr.mxu0 0.0
  %33 = vmatpush1.msra.mxu0 0.0
  %34 = vmatprep.subr.mxu0 0.0
  %35 = vmatpush1.msra.mxu0 0.0
  %36 = vmatprep.subr.mxu0 0.0
  %37 = vmatpush1.msra.mxu0 0.0
  %38 = vmatprep.subr.mxu0 0.0
  %39 = vmatpush1.msra.mxu0 0.0
  %40 = vmatprep.subr.mxu0 0.0
  %41 = vmatpush1.msra.mxu0 0.0
  %42 = vmatprep.subr.mxu0 0.0
  %43 = vmatpush1.msra.mxu0 0.0
  %44 = vmatprep.subr.mxu0 0.0
  %45 = vmatpush1.msra.mxu0 0.0
  %46 = vmatprep.subr.mxu0 0.0
  %47 = vmatpush1.msra.mxu0 0.0
  %48 = vmatprep.subr.mxu0 0.0
  %49 = vmatpush1.msra.mxu0 0.0
  %50 = vmatprep.subr.mxu0 0.0
  %51 = vmatpush1.msra.mxu0 0.0
  %52 = vmatprep.subr.mxu0 0.0
  %53 = vmatpush1.msra.mxu0 0.0
  %54 = vmatprep.subr.mxu0 0.0
  %55 = vmatpush1.msra.mxu0 0.0
  %56 = vmatprep.subr.mxu0 0.0
  %57 = vmatpush1.msra.mxu0 0.0
  %58 = vmatprep.subr.mxu0 0.0
  %59 = vmatpush1.msra.mxu0 0.0
  %60 = vmatprep.subr.mxu0 0.0
  %61 = vmatpush1.msra.mxu0 0.0
  %62 = vmatprep.subr.mxu0 0.0
  %63 = vmatpush1.msra.mxu0 0.0
  %64 = vmatprep.subr.mxu0 0.0
  %65 = vmatpush1.msra.mxu0 0.0
  %66 = vmatprep.subr.mxu0 0.0
  %67 = vmatpush1.msra.mxu0 0.0
  %68 = vmatprep.subr.mxu0 0.0
  %69 = vmatpush1.msra.mxu0 0.0
  %70 = vmatprep.subr.mxu0 0.0
  %71 = vmatpush1.msra.mxu0 0.0
  %72 = vmatprep.subr.mxu0 0.0
  %73 = vmatpush1.msra.mxu0 0.0
  %74 = vmatprep.subr.mxu0 0.0
  %75 = vmatpush1.msra.mxu0 0.0
  %76 = vmatprep.subr.mxu0 0.0
  %77 = vmatpush1.msra.mxu0 0.0
  %78 = vmatprep.subr.mxu0 0.0
  %79 = vmatpush1.msra.mxu0 0.0
  %80 = vmatprep.subr.mxu0 0.0
  %81 = vmatpush1.msra.mxu0 0.0
  %82 = vmatprep.subr.mxu0 0.0
  %83 = vmatpush1.msra.mxu0 0.0
  %84 = vmatprep.subr.mxu0 0.0
  %85 = vmatpush1.msra.mxu0 0.0
  %86 = vmatprep.subr.mxu0 0.0
  %87 = vmatpush1.msra.mxu0 0.0
  %88 = vmatprep.subr.mxu0 0.0
  %89 = vmatpush1.msra.mxu0 0.0
  %90 = vmatprep.subr.mxu0 0.0
  %91 = vmatpush1.msra.mxu0 0.0
  %92 = vmatprep.mubr.f32.mxu0 0.0
  %93 = vmatmul.mubr.f32.gmra.mrb[0].mxu0 %v23
  %v94 = vpop.f32.mrb[0].mxu0
  %v95 = vadd.f32 0.0, %v94
  %v96 = vpop.f32.mrb[0].mxu0
  %97 = vmatprep.mubr.f32.mxu0 0.0
  %98 = vmatmul.mubr.f32.gmra.mrb[0].mxu0 %v26
  %v99 = vpop.f32.mrb[0].mxu0
  %v100 = vadd.f32 0.0, %v99
  %v101 = vpop.f32.mrb[0].mxu0
  %102 = vdwg.mxu0
  %103 = vst [vmem:[#allocation2] sm:$0xff] %v95
  %104 = vst [vmem:[#allocation2 + $0x30] sm:$0xff] %v100
  %s105 = scalar_lea.vmem %s0, 16
  %v106 = vld [vmem:[%s105] sm:$0xff]
  %v107 = vld [vmem:[%s105 + $0x8] sm:$0xff]
  %v109 = vsel %vm21, %v106, 0
  %v112 = vsel %vm21, %v107, 0
  %114 = vmatprep.subr.mxu0 0.0
  %115 = vmatpush1.msra.mxu0 %v17
  %116 = vmatprep.subr.mxu0 0.0
  %117 = vmatpush1.msra.mxu0 %v18
  %118 = vmatprep.subr.mxu0 0.0
  %119 = vmatpush1.msra.mxu0 0.0
  %120 = vmatprep.subr.mxu0 0.0
  %121 = vmatpush1.msra.mxu0 0.0
  %122 = vmatprep.subr.mxu0 0.0
  %123 = vmatpush1.msra.mxu0 0.0
  %124 = vmatprep.subr.mxu0 0.0
  %125 = vmatpush1.msra.mxu0 0.0
  %126 = vmatprep.subr.mxu0 0.0
  %127 = vmatpush1.msra.mxu0 0.0
  %128 = vmatprep.subr.mxu0 0.0
  %129 = vmatpush1.msra.mxu0 0.0
  %130 = vmatprep.subr.mxu0 0.0
  %131 = vmatpush1.msra.mxu0 0.0
  %132 = vmatprep.subr.mxu0 0.0
  %133 = vmatpush1.msra.mxu0 0.0
  %134 = vmatprep.subr.mxu0 0.0
  %135 = vmatpush1.msra.mxu0 0.0
  %136 = vmatprep.subr.mxu0 0.0
  %137 = vmatpush1.msra.mxu0 0.0
  %138 = vmatprep.subr.mxu0 0.0
  %139 = vmatpush1.msra.mxu0 0.0
  %140 = vmatprep.subr.mxu0 0.0
  %141 = vmatpush1.msra.mxu0 0.0
  %142 = vmatprep.subr.mxu0 0.0
  %143 = vmatpush1.msra.mxu0 0.0
  %144 = vmatprep.subr.mxu0 0.0
  %145 = vmatpush1.msra.mxu0 0.0
  %146 = vmatprep.subr.mxu0 0.0
  %147 = vmatpush1.msra.mxu0 0.0
  %148 = vmatprep.subr.mxu0 0.0
  %149 = vmatpush1.msra.mxu0 0.0
  %150 = vmatprep.subr.mxu0 0.0
  %151 = vmatpush1.msra.mxu0 0.0
  %152 = vmatprep.subr.mxu0 0.0
  %153 = vmatpush1.msra.mxu0 0.0
  %154 = vmatprep.subr.mxu0 0.0
  %155 = vmatpush1.msra.mxu0 0.0
  %156 = vmatprep.subr.mxu0 0.0
  %157 = vmatpush1.msra.mxu0 0.0
  %158 = vmatprep.subr.mxu0 0.0
  %159 = vmatpush1.msra.mxu0 0.0
  %160 = vmatprep.subr.mxu0 0.0
  %161 = vmatpush1.msra.mxu0 0.0
  %162 = vmatprep.subr.mxu0 0.0
  %163 = vmatpush1.msra.mxu0 0.0
  %164 = vmatprep.subr.mxu0 0.0
  %165 = vmatpush1.msra.mxu0 0.0
  %166 = vmatprep.subr.mxu0 0.0
  %167 = vmatpush1.msra.mxu0 0.0
  %168 = vmatprep.subr.mxu0 0.0
  %169 = vmatpush1.msra.mxu0 0.0
  %170 = vmatprep.subr.mxu0 0.0
  %171 = vmatpush1.msra.mxu0 0.0
  %172 = vmatprep.subr.mxu0 0.0
  %173 = vmatpush1.msra.mxu0 0.0
  %174 = vmatprep.subr.mxu0 0.0
  %175 = vmatpush1.msra.mxu0 0.0
  %176 = vmatprep.subr.mxu0 0.0
  %177 = vmatpush1.msra.mxu0 0.0
  %178 = vmatprep.mubr.f32.mxu0 0.0
  %179 = vmatmul.mubr.f32.gmra.mrb[0].mxu0 %v109
  %v180 = vpop.f32.mrb[0].mxu0
  %v181 = vadd.f32 0.0, %v180
  %v182 = vpop.f32.mrb[0].mxu0
  %183 = vmatprep.mubr.f32.mxu0 0.0
  %184 = vmatmul.mubr.f32.gmra.mrb[0].mxu0 %v112
  %v185 = vpop.f32.mrb[0].mxu0
  %v186 = vadd.f32 0.0, %v185
  %v187 = vpop.f32.mrb[0].mxu0
  %188 = vdwg.mxu0
  %189 = vst [vmem:[#allocation2 + $0x8] sm:$0xff] %v181
  %190 = vst [vmem:[#allocation2 + $0x38] sm:$0xff] %v186
  %s191 = scalar_lea.vmem %s0, 32
  %v192 = vld [vmem:[%s191] sm:$0xff]
  %v193 = vld [vmem:[%s191 + $0x8] sm:$0xff]
  %v195 = vsel %vm21, %v192, 0
  %v198 = vsel %vm21, %v193, 0
  %200 = vmatprep.subr.mxu0 0.0
  %201 = vmatpush1.msra.mxu0 %v17
  %202 = vmatprep.subr.mxu0 0.0
  %203 = vmatpush1.msra.mxu0 %v18
  %204 = vmatprep.subr.mxu0 0.0
  %205 = vmatpush1.msra.mxu0 0.0
  %206 = vmatprep.subr.mxu0 0.0
  %207 = vmatpush1.msra.mxu0 0.0
  %208 = vmatprep.subr.mxu0 0.0
  %209 = vmatpush1.msra.mxu0 0.0
  %210 = vmatprep.subr.mxu0 0.0
  %211 = vmatpush1.msra.mxu0 0.0
  %212 = vmatprep.subr.mxu0 0.0
  %213 = vmatpush1.msra.mxu0 0.0
  %214 = vmatprep.subr.mxu0 0.0
  %215 = vmatpush1.msra.mxu0 0.0
  %216 = vmatprep.subr.mxu0 0.0
  %217 = vmatpush1.msra.mxu0 0.0
  %218 = vmatprep.subr.mxu0 0.0
  %219 = vmatpush1.msra.mxu0 0.0
  %220 = vmatprep.subr.mxu0 0.0
  %221 = vmatpush1.msra.mxu0 0.0
  %222 = vmatprep.subr.mxu0 0.0
  %223 = vmatpush1.msra.mxu0 0.0
  %224 = vmatprep.subr.mxu0 0.0
  %225 = vmatpush1.msra.mxu0 0.0
  %226 = vmatprep.subr.mxu0 0.0
  %227 = vmatpush1.msra.mxu0 0.0
  %228 = vmatprep.subr.mxu0 0.0
  %229 = vmatpush1.msra.mxu0 0.0
  %230 = vmatprep.subr.mxu0 0.0
  %231 = vmatpush1.msra.mxu0 0.0
  %232 = vmatprep.subr.mxu0 0.0
  %233 = vmatpush1.msra.mxu0 0.0
  %234 = vmatprep.subr.mxu0 0.0
  %235 = vmatpush1.msra.mxu0 0.0
  %236 = vmatprep.subr.mxu0 0.0
  %237 = vmatpush1.msra.mxu0 0.0
  %238 = vmatprep.subr.mxu0 0.0
  %239 = vmatpush1.msra.mxu0 0.0
  %240 = vmatprep.subr.mxu0 0.0
  %241 = vmatpush1.msra.mxu0 0.0
  %242 = vmatprep.subr.mxu0 0.0
  %243 = vmatpush1.msra.mxu0 0.0
  %244 = vmatprep.subr.mxu0 0.0
  %245 = vmatpush1.msra.mxu0 0.0
  %246 = vmatprep.subr.mxu0 0.0
  %247 = vmatpush1.msra.mxu0 0.0
  %248 = vmatprep.subr.mxu0 0.0
  %249 = vmatpush1.msra.mxu0 0.0
  %250 = vmatprep.subr.mxu0 0.0
  %251 = vmatpush1.msra.mxu0 0.0
  %252 = vmatprep.subr.mxu0 0.0
  %253 = vmatpush1.msra.mxu0 0.0
  %254 = vmatprep.subr.mxu0 0.0
  %255 = vmatpush1.msra.mxu0 0.0
  %256 = vmatprep.subr.mxu0 0.0
  %257 = vmatpush1.msra.mxu0 0.0
  %258 = vmatprep.subr.mxu0 0.0
  %259 = vmatpush1.msra.mxu0 0.0
  %260 = vmatprep.subr.mxu0 0.0
  %261 = vmatpush1.msra.mxu0 0.0
  %262 = vmatprep.subr.mxu0 0.0
  %263 = vmatpush1.msra.mxu0 0.0
  %264 = vmatprep.mubr.f32.mxu0 0.0
  %265 = vmatmul.mubr.f32.gmra.mrb[0].mxu0 %v195
  %v266 = vpop.f32.mrb[0].mxu0
  %v267 = vadd.f32 0.0, %v266
  %v268 = vpop.f32.mrb[0].mxu0
  %269 = vmatprep.mubr.f32.mxu0 0.0
  %270 = vmatmul.mubr.f32.gmra.mrb[0].mxu0 %v198
  %v271 = vpop.f32.mrb[0].mxu0
  %v272 = vadd.f32 0.0, %v271
  %v273 = vpop.f32.mrb[0].mxu0
  %274 = vdwg.mxu0
  %275 = vst [vmem:[#allocation2 + $0x10] sm:$0xff] %v267
  %276 = vst [vmem:[#allocation2 + $0x40] sm:$0xff] %v272
  %s277 = scalar_lea.vmem %s0, 48
  %v278 = vld [vmem:[%s277] sm:$0xff]
  %v279 = vld [vmem:[%s277 + $0x8] sm:$0xff]
  %v281 = vsel %vm21, %v278, 0
  %v284 = vsel %vm21, %v279, 0
  %286 = vmatprep.subr.mxu0 0.0
  %287 = vmatpush1.msra.mxu0 %v17
  %288 = vmatprep.subr.mxu0 0.0
  %289 = vmatpush1.msra.mxu0 %v18
  %290 = vmatprep.subr.mxu0 0.0
  %291 = vmatpush1.msra.mxu0 0.0
  %292 = vmatprep.subr.mxu0 0.0
  %293 = vmatpush1.msra.mxu0 0.0
  %294 = vmatprep.subr.mxu0 0.0
  %295 = vmatpush1.msra.mxu0 0.0
  %296 = vmatprep.subr.mxu0 0.0
  %297 = vmatpush1.msra.mxu0 0.0
  %298 = vmatprep.subr.mxu0 0.0
  %299 = vmatpush1.msra.mxu0 0.0
  %300 = vmatprep.subr.mxu0 0.0
  %301 = vmatpush1.msra.mxu0 0.0
  %302 = vmatprep.subr.mxu0 0.0
  %303 = vmatpush1.msra.mxu0 0.0
  %304 = vmatprep.subr.mxu0 0.0
  %305 = vmatpush1.msra.mxu0 0.0
  %306 = vmatprep.subr.mxu0 0.0
  %307 = vmatpush1.msra.mxu0 0.0
  %308 = vmatprep.subr.mxu0 0.0
  %309 = vmatpush1.msra.mxu0 0.0
  %310 = vmatprep.subr.mxu0 0.0
  %311 = vmatpush1.msra.mxu0 0.0
  %312 = vmatprep.subr.mxu0 0.0
  %313 = vmatpush1.msra.mxu0 0.0
  %314 = vmatprep.subr.mxu0 0.0
  %315 = vmatpush1.msra.mxu0 0.0
  %316 = vmatprep.subr.mxu0 0.0
  %317 = vmatpush1.msra.mxu0 0.0
  %318 = vmatprep.subr.mxu0 0.0
  %319 = vmatpush1.msra.mxu0 0.0
  %320 = vmatprep.subr.mxu0 0.0
  %321 = vmatpush1.msra.mxu0 0.0
  %322 = vmatprep.subr.mxu0 0.0
  %323 = vmatpush1.msra.mxu0 0.0
  %324 = vmatprep.subr.mxu0 0.0
  %325 = vmatpush1.msra.mxu0 0.0
  %326 = vmatprep.subr.mxu0 0.0
  %327 = vmatpush1.msra.mxu0 0.0
  %328 = vmatprep.subr.mxu0 0.0
  %329 = vmatpush1.msra.mxu0 0.0
  %330 = vmatprep.subr.mxu0 0.0
  %331 = vmatpush1.msra.mxu0 0.0
  %332 = vmatprep.subr.mxu0 0.0
  %333 = vmatpush1.msra.mxu0 0.0
  %334 = vmatprep.subr.mxu0 0.0
  %335 = vmatpush1.msra.mxu0 0.0
  %336 = vmatprep.subr.mxu0 0.0
  %337 = vmatpush1.msra.mxu0 0.0
  %338 = vmatprep.subr.mxu0 0.0
  %339 = vmatpush1.msra.mxu0 0.0
  %340 = vmatprep.subr.mxu0 0.0
  %341 = vmatpush1.msra.mxu0 0.0
  %342 = vmatprep.subr.mxu0 0.0
  %343 = vmatpush1.msra.mxu0 0.0
  %344 = vmatprep.subr.mxu0 0.0
  %345 = vmatpush1.msra.mxu0 0.0
  %346 = vmatprep.subr.mxu0 0.0
  %347 = vmatpush1.msra.mxu0 0.0
  %348 = vmatprep.subr.mxu0 0.0
  %349 = vmatpush1.msra.mxu0 0.0
  %350 = vmatprep.mubr.f32.mxu0 0.0
  %351 = vmatmul.mubr.f32.gmra.mrb[0].mxu0 %v281
  %v352 = vpop.f32.mrb[0].mxu0
  %v353 = vadd.f32 0.0, %v352
  %v354 = vpop.f32.mrb[0].mxu0
  %355 = vmatprep.mubr.f32.mxu0 0.0
  %356 = vmatmul.mubr.f32.gmra.mrb[0].mxu0 %v284
  %v357 = vpop.f32.mrb[0].mxu0
  %v358 = vadd.f32 0.0, %v357
  %v359 = vpop.f32.mrb[0].mxu0
  %360 = vdwg.mxu0
  %361 = vst [vmem:[#allocation2 + $0x18] sm:$0xff] %v353
  %362 = vst [vmem:[#allocation2 + $0x48] sm:$0xff] %v358
  %s363 = scalar_lea.vmem %s0, 64
  %v364 = vld [vmem:[%s363] sm:$0xff]
  %v365 = vld [vmem:[%s363 + $0x8] sm:$0xff]
  %v367 = vsel %vm21, %v364, 0
  %v370 = vsel %vm21, %v365, 0
  %372 = vmatprep.subr.mxu0 0.0
  %373 = vmatpush1.msra.mxu0 %v17
  %374 = vmatprep.subr.mxu0 0.0
  %375 = vmatpush1.msra.mxu0 %v18
  %376 = vmatprep.subr.mxu0 0.0
  %377 = vmatpush1.msra.mxu0 0.0
  %378 = vmatprep.subr.mxu0 0.0
  %379 = vmatpush1.msra.mxu0 0.0
  %380 = vmatprep.subr.mxu0 0.0
  %381 = vmatpush1.msra.mxu0 0.0
  %382 = vmatprep.subr.mxu0 0.0
  %383 = vmatpush1.msra.mxu0 0.0
  %384 = vmatprep.subr.mxu0 0.0
  %385 = vmatpush1.msra.mxu0 0.0
  %386 = vmatprep.subr.mxu0 0.0
  %387 = vmatpush1.msra.mxu0 0.0
  %388 = vmatprep.subr.mxu0 0.0
  %389 = vmatpush1.msra.mxu0 0.0
  %390 = vmatprep.subr.mxu0 0.0
  %391 = vmatpush1.msra.mxu0 0.0
  %392 = vmatprep.subr.mxu0 0.0
  %393 = vmatpush1.msra.mxu0 0.0
  %394 = vmatprep.subr.mxu0 0.0
  %395 = vmatpush1.msra.mxu0 0.0
  %396 = vmatprep.subr.mxu0 0.0
  %397 = vmatpush1.msra.mxu0 0.0
  %398 = vmatprep.subr.mxu0 0.0
  %399 = vmatpush1.msra.mxu0 0.0
  %400 = vmatprep.subr.mxu0 0.0
  %401 = vmatpush1.msra.mxu0 0.0
  %402 = vmatprep.subr.mxu0 0.0
  %403 = vmatpush1.msra.mxu0 0.0
  %404 = vmatprep.subr.mxu0 0.0
  %405 = vmatpush1.msra.mxu0 0.0
  %406 = vmatprep.subr.mxu0 0.0
  %407 = vmatpush1.msra.mxu0 0.0
  %408 = vmatprep.subr.mxu0 0.0
  %409 = vmatpush1.msra.mxu0 0.0
  %410 = vmatprep.subr.mxu0 0.0
  %411 = vmatpush1.msra.mxu0 0.0
  %412 = vmatprep.subr.mxu0 0.0
  %413 = vmatpush1.msra.mxu0 0.0
  %414 = vmatprep.subr.mxu0 0.0
  %415 = vmatpush1.msra.mxu0 0.0
  %416 = vmatprep.subr.mxu0 0.0
  %417 = vmatpush1.msra.mxu0 0.0
  %418 = vmatprep.subr.mxu0 0.0
  %419 = vmatpush1.msra.mxu0 0.0
  %420 = vmatprep.subr.mxu0 0.0
  %421 = vmatpush1.msra.mxu0 0.0
  %422 = vmatprep.subr.mxu0 0.0
  %423 = vmatpush1.msra.mxu0 0.0
  %424 = vmatprep.subr.mxu0 0.0
  %425 = vmatpush1.msra.mxu0 0.0
  %426 = vmatprep.subr.mxu0 0.0
  %427 = vmatpush1.msra.mxu0 0.0
  %428 = vmatprep.subr.mxu0 0.0
  %429 = vmatpush1.msra.mxu0 0.0
  %430 = vmatprep.subr.mxu0 0.0
  %431 = vmatpush1.msra.mxu0 0.0
  %432 = vmatprep.subr.mxu0 0.0
  %433 = vmatpush1.msra.mxu0 0.0
  %434 = vmatprep.subr.mxu0 0.0
  %435 = vmatpush1.msra.mxu0 0.0
  %436 = vmatprep.mubr.f32.mxu0 0.0
  %437 = vmatmul.mubr.f32.gmra.mrb[0].mxu0 %v367
  %v438 = vpop.f32.mrb[0].mxu0
  %v439 = vadd.f32 0.0, %v438
  %v440 = vpop.f32.mrb[0].mxu0
  %441 = vmatprep.mubr.f32.mxu0 0.0
  %442 = vmatmul.mubr.f32.gmra.mrb[0].mxu0 %v370
  %v443 = vpop.f32.mrb[0].mxu0
  %v444 = vadd.f32 0.0, %v443
  %v445 = vpop.f32.mrb[0].mxu0
  %446 = vdwg.mxu0
  %447 = vst [vmem:[#allocation2 + $0x20] sm:$0xff] %v439
  %448 = vst [vmem:[#allocation2 + $0x50] sm:$0xff] %v444
  %s449 = scalar_lea.vmem %s0, 80
  %v450 = vld [vmem:[%s449] sm:$0xff]
  %v451 = vld [vmem:[%s449 + $0x8] sm:$0xff]
  %v453 = vsel %vm21, %v450, 0
  %v456 = vsel %vm21, %v451, 0
  %458 = vmatprep.subr.mxu0 0.0
  %459 = vmatpush1.msra.mxu0 %v17
  %460 = vmatprep.subr.mxu0 0.0
  %461 = vmatpush1.msra.mxu0 %v18
  %462 = vmatprep.subr.mxu0 0.0
  %463 = vmatpush1.msra.mxu0 0.0
  %464 = vmatprep.subr.mxu0 0.0
  %465 = vmatpush1.msra.mxu0 0.0
  %466 = vmatprep.subr.mxu0 0.0
  %467 = vmatpush1.msra.mxu0 0.0
  %468 = vmatprep.subr.mxu0 0.0
  %469 = vmatpush1.msra.mxu0 0.0
  %470 = vmatprep.subr.mxu0 0.0
  %471 = vmatpush1.msra.mxu0 0.0
  %472 = vmatprep.subr.mxu0 0.0
  %473 = vmatpush1.msra.mxu0 0.0
  %474 = vmatprep.subr.mxu0 0.0
  %475 = vmatpush1.msra.mxu0 0.0
  %476 = vmatprep.subr.mxu0 0.0
  %477 = vmatpush1.msra.mxu0 0.0
  %478 = vmatprep.subr.mxu0 0.0
  %479 = vmatpush1.msra.mxu0 0.0
  %480 = vmatprep.subr.mxu0 0.0
  %481 = vmatpush1.msra.mxu0 0.0
  %482 = vmatprep.subr.mxu0 0.0
  %483 = vmatpush1.msra.mxu0 0.0
  %484 = vmatprep.subr.mxu0 0.0
  %485 = vmatpush1.msra.mxu0 0.0
  %486 = vmatprep.subr.mxu0 0.0
  %487 = vmatpush1.msra.mxu0 0.0
  %488 = vmatprep.subr.mxu0 0.0
  %489 = vmatpush1.msra.mxu0 0.0
  %490 = vmatprep.subr.mxu0 0.0
  %491 = vmatpush1.msra.mxu0 0.0
  %492 = vmatprep.subr.mxu0 0.0
  %493 = vmatpush1.msra.mxu0 0.0
  %494 = vmatprep.subr.mxu0 0.0
  %495 = vmatpush1.msra.mxu0 0.0
  %496 = vmatprep.subr.mxu0 0.0
  %497 = vmatpush1.msra.mxu0 0.0
  %498 = vmatprep.subr.mxu0 0.0
  %499 = vmatpush1.msra.mxu0 0.0
  %500 = vmatprep.subr.mxu0 0.0
  %501 = vmatpush1.msra.mxu0 0.0
  %502 = vmatprep.subr.mxu0 0.0
  %503 = vmatpush1.msra.mxu0 0.0
  %504 = vmatprep.subr.mxu0 0.0
  %505 = vmatpush1.msra.mxu0 0.0
  %506 = vmatprep.subr.mxu0 0.0
  %507 = vmatpush1.msra.mxu0 0.0
  %508 = vmatprep.subr.mxu0 0.0
  %509 = vmatpush1.msra.mxu0 0.0
  %510 = vmatprep.subr.mxu0 0.0
  %511 = vmatpush1.msra.mxu0 0.0
  %512 = vmatprep.subr.mxu0 0.0
  %513 = vmatpush1.msra.mxu0 0.0
  %514 = vmatprep.subr.mxu0 0.0
  %515 = vmatpush1.msra.mxu0 0.0
  %516 = vmatprep.subr.mxu0 0.0
  %517 = vmatpush1.msra.mxu0 0.0
  %518 = vmatprep.subr.mxu0 0.0
  %519 = vmatpush1.msra.mxu0 0.0
  %520 = vmatprep.subr.mxu0 0.0
  %521 = vmatpush1.msra.mxu0 0.0
  %522 = vmatprep.mubr.f32.mxu0 0.0
  %523 = vmatmul.mubr.f32.gmra.mrb[0].mxu0 %v453
  %v524 = vpop.f32.mrb[0].mxu0
  %v525 = vadd.f32 0.0, %v524
  %v526 = vpop.f32.mrb[0].mxu0
  %527 = vmatprep.mubr.f32.mxu0 0.0
  %528 = vmatmul.mubr.f32.gmra.mrb[0].mxu0 %v456
  %v529 = vpop.f32.mrb[0].mxu0
  %v530 = vadd.f32 0.0, %v529
  %v531 = vpop.f32.mrb[0].mxu0
  %532 = vdwg.mxu0
  %533 = vst [vmem:[#allocation2 + $0x28] sm:$0xff] %v525
  %534 = vst [vmem:[#allocation2 + $0x58] sm:$0xff] %v530
  %v535 = vld [vmem:[#allocation2] sm:$0xff]
  %v536 = vld [vmem:[#allocation2 + $0x8] sm:$0xff]
  %v537 = vld [vmem:[#allocation2 + $0x10] sm:$0xff]
  %v538 = vld [vmem:[#allocation2 + $0x18] sm:$0xff]
  %v539 = vld [vmem:[#allocation2 + $0x20] sm:$0xff]
  %v540 = vld [vmem:[#allocation2 + $0x28] sm:$0xff]
  %v541 = vld [vmem:[#allocation2 + $0x30] sm:$0xff]
  %v542 = vld [vmem:[#allocation2 + $0x38] sm:$0xff]
  %v543 = vld [vmem:[#allocation2 + $0x40] sm:$0xff]
  %v544 = vld [vmem:[#allocation2 + $0x48] sm:$0xff]
  %v545 = vld [vmem:[#allocation2 + $0x50] sm:$0xff]
  %v546 = vld [vmem:[#allocation2 + $0x58] sm:$0xff]
  %v547 = vld [vmem:[%s2] sm:$0xff]
  %v548 = vld [vmem:[%s2 + $0x8] sm:$0xff]
  %v549 = vld [vmem:[%s2 + $0x10] sm:$0xff]
  %v550 = vld [vmem:[%s2 + $0x18] sm:$0xff]
  %v551 = vld [vmem:[%s2 + $0x20] sm:$0xff]
  %v552 = vld [vmem:[%s2 + $0x28] sm:$0xff]
  %v553 = vld [vmem:[%s2 + $0x30] sm:$0xff]
  %v554 = vld [vmem:[%s2 + $0x38] sm:$0xff]
  %v555 = vld [vmem:[%s2 + $0x40] sm:$0xff]
  %v556 = vld [vmem:[%s2 + $0x48] sm:$0xff]
  %v557 = vld [vmem:[%s2 + $0x50] sm:$0xff]
  %v558 = vld [vmem:[%s2 + $0x58] sm:$0xff]
  %v559 = vld [vmem:[%s2 + $0x60] sm:$0xff]
  %v560 = vld [vmem:[%s2 + $0x68] sm:$0xff]
  %v561 = vld [vmem:[%s2 + $0x70] sm:$0xff]
  %v562 = vld [vmem:[%s2 + $0x78] sm:$0xff]
  %v563 = vld [vmem:[%s2 + $0x80] sm:$0xff]
  %v564 = vld [vmem:[%s2 + $0x88] sm:$0xff]
  %v565 = vld [vmem:[%s2 + $0x90] sm:$0xff]
  %v566 = vld [vmem:[%s2 + $0x98] sm:$0xff]
  %v567 = vld [vmem:[%s2 + $0xa0] sm:$0xff]
  %v568 = vld [vmem:[%s2 + $0xa8] sm:$0xff]
  %v569 = vld [vmem:[%s2 + $0xb0] sm:$0xff]
  %v570 = vld [vmem:[%s2 + $0xb8] sm:$0xff]
  %v571 = vld [vmem:[%s2 + $0xc0] sm:$0xff]
  %v572 = vld [vmem:[%s2 + $0xc8] sm:$0xff]
  %v573 = vld [vmem:[%s2 + $0xd0] sm:$0xff]
  %v574 = vld [vmem:[%s2 + $0xd8] sm:$0xff]
  %v575 = vld [vmem:[%s2 + $0xe0] sm:$0xff]
  %v576 = vld [vmem:[%s2 + $0xe8] sm:$0xff]
  %v577 = vld [vmem:[%s2 + $0xf0] sm:$0xff]
  %v578 = vld [vmem:[%s2 + $0xf8] sm:$0xff]
  %v579 = vld [vmem:[%s2 + $0x100] sm:$0xff]
  %v580 = vld [vmem:[%s2 + $0x108] sm:$0xff]
  %v581 = vld [vmem:[%s2 + $0x110] sm:$0xff]
  %v582 = vld [vmem:[%s2 + $0x118] sm:$0xff]
  %v583 = vld [vmem:[%s2 + $0x120] sm:$0xff]
  %v584 = vld [vmem:[%s2 + $0x128] sm:$0xff]
  %v585 = vld [vmem:[%s2 + $0x130] sm:$0xff]
  %v586 = vld [vmem:[%s2 + $0x138] sm:$0xff]
  %v587 = vld [vmem:[%s2 + $0x140] sm:$0xff]
  %v588 = vld [vmem:[%s2 + $0x148] sm:$0xff]
  %v589 = vld [vmem:[%s2 + $0x150] sm:$0xff]
  %v590 = vld [vmem:[%s2 + $0x158] sm:$0xff]
  %v591 = vld [vmem:[%s2 + $0x160] sm:$0xff]
  %v592 = vld [vmem:[%s2 + $0x168] sm:$0xff]
  %v593 = vld [vmem:[%s2 + $0x170] sm:$0xff]
  %v594 = vld [vmem:[%s2 + $0x178] sm:$0xff]
  %v595 = vld [vmem:[%s2 + $0x180] sm:$0xff]
  %v596 = vld [vmem:[%s2 + $0x188] sm:$0xff]
  %v597 = vld [vmem:[%s2 + $0x190] sm:$0xff]
  %v598 = vld [vmem:[%s2 + $0x198] sm:$0xff]
  %v599 = vld [vmem:[%s2 + $0x1a0] sm:$0xff]
  %v600 = vld [vmem:[%s2 + $0x1a8] sm:$0xff]
  %v601 = vld [vmem:[%s2 + $0x1b0] sm:$0xff]
  %v602 = vld [vmem:[%s2 + $0x1b8] sm:$0xff]
  %v603 = vld [vmem:[%s2 + $0x1c0] sm:$0xff]
  %v604 = vld [vmem:[%s2 + $0x1c8] sm:$0xff]
  %v605 = vld [vmem:[%s2 + $0x1d0] sm:$0xff]
  %v606 = vld [vmem:[%s2 + $0x1d8] sm:$0xff]
  %v607 = vld [vmem:[%s2 + $0x1e0] sm:$0xff]
  %v608 = vld [vmem:[%s2 + $0x1e8] sm:$0xff]
  %v609 = vld [vmem:[%s2 + $0x1f0] sm:$0xff]
  %v610 = vld [vmem:[%s2 + $0x1f8] sm:$0xff]
  %v611 = vld [vmem:[%s2 + $0x200] sm:$0xff]
  %v612 = vld [vmem:[%s2 + $0x208] sm:$0xff]
  %v613 = vld [vmem:[%s2 + $0x210] sm:$0xff]
  %v614 = vld [vmem:[%s2 + $0x218] sm:$0xff]
  %v615 = vld [vmem:[%s2 + $0x220] sm:$0xff]
  %v616 = vld [vmem:[%s2 + $0x228] sm:$0xff]
  %v617 = vld [vmem:[%s2 + $0x230] sm:$0xff]
  %v618 = vld [vmem:[%s2 + $0x238] sm:$0xff]
  %v619 = vld [vmem:[%s2 + $0x240] sm:$0xff]
  %v620 = vld [vmem:[%s2 + $0x248] sm:$0xff]
  %v621 = vld [vmem:[%s2 + $0x250] sm:$0xff]
  %v622 = vld [vmem:[%s2 + $0x258] sm:$0xff]
  %v623 = vld [vmem:[%s2 + $0x260] sm:$0xff]
  %v624 = vld [vmem:[%s2 + $0x268] sm:$0xff]
  %v625 = vld [vmem:[%s2 + $0x270] sm:$0xff]
  %v626 = vld [vmem:[%s2 + $0x278] sm:$0xff]
  %v627 = vld [vmem:[%s2 + $0x280] sm:$0xff]
  %v628 = vld [vmem:[%s2 + $0x288] sm:$0xff]
  %v629 = vld [vmem:[%s2 + $0x290] sm:$0xff]
  %v630 = vld [vmem:[%s2 + $0x298] sm:$0xff]
  %v631 = vld [vmem:[%s2 + $0x2a0] sm:$0xff]
  %v632 = vld [vmem:[%s2 + $0x2a8] sm:$0xff]
  %v633 = vld [vmem:[%s2 + $0x2b0] sm:$0xff]
  %v634 = vld [vmem:[%s2 + $0x2b8] sm:$0xff]
  %v635 = vld [vmem:[%s2 + $0x2c0] sm:$0xff]
  %v636 = vld [vmem:[%s2 + $0x2c8] sm:$0xff]
  %v637 = vld [vmem:[%s2 + $0x2d0] sm:$0xff]
  %v638 = vld [vmem:[%s2 + $0x2d8] sm:$0xff]
  %v639 = vld [vmem:[%s2 + $0x2e0] sm:$0xff]
  %v640 = vld [vmem:[%s2 + $0x2e8] sm:$0xff]
  %v641 = vld [vmem:[%s2 + $0x2f0] sm:$0xff]
  %v642 = vld [vmem:[%s2 + $0x2f8] sm:$0xff]
  %v643 = vld [vmem:[%s3] sm:$0x1]
  %v645 = vlaneseq
  %v646 = vshrl.u32 %v645, 7
  %v647 = vsub.s32 0, %v646
  %v648 = vrot.slane %v643, %v647
  %650 = vmatprep.subr.mxu0 0.0
  %651 = vmatpush1.msra.mxu0 %v547
  %652 = vmatprep.subr.mxu0 0.0
  %653 = vmatpush1.msra.mxu0 %v548
  %654 = vmatprep.subr.mxu0 0.0
  %655 = vmatpush1.msra.mxu0 %v549
  %656 = vmatprep.subr.mxu0 0.0
  %657 = vmatpush1.msra.mxu0 %v550
  %658 = vmatprep.subr.mxu0 0.0
  %659 = vmatpush1.msra.mxu0 %v551
  %660 = vmatprep.subr.mxu0 0.0
  %661 = vmatpush1.msra.mxu0 %v552
  %662 = vmatprep.subr.mxu0 0.0
  %663 = vmatpush1.msra.mxu0 %v553
  %664 = vmatprep.subr.mxu0 0.0
  %665 = vmatpush1.msra.mxu0 %v554
  %666 = vmatprep.subr.mxu0 0.0
  %667 = vmatpush1.msra.mxu0 %v555
  %668 = vmatprep.subr.mxu0 0.0
  %669 = vmatpush1.msra.mxu0 %v556
  %670 = vmatprep.subr.mxu0 0.0
  %671 = vmatpush1.msra.mxu0 %v557
  %672 = vmatprep.subr.mxu0 0.0
  %673 = vmatpush1.msra.mxu0 %v558
  %674 = vmatprep.subr.mxu0 0.0
  %675 = vmatpush1.msra.mxu0 %v559
  %676 = vmatprep.subr.mxu0 0.0
  %677 = vmatpush1.msra.mxu0 %v560
  %678 = vmatprep.subr.mxu0 0.0
  %679 = vmatpush1.msra.mxu0 %v561
  %680 = vmatprep.subr.mxu0 0.0
  %681 = vmatpush1.msra.mxu0 %v562
  %682 = vmatprep.subr.mxu0 0.0
  %683 = vmatpush1.msra.mxu0 %v563
  %684 = vmatprep.subr.mxu0 0.0
  %685 = vmatpush1.msra.mxu0 %v564
  %686 = vmatprep.subr.mxu0 0.0
  %687 = vmatpush1.msra.mxu0 %v565
  %688 = vmatprep.subr.mxu0 0.0
  %689 = vmatpush1.msra.mxu0 %v566
  %690 = vmatprep.subr.mxu0 0.0
  %691 = vmatpush1.msra.mxu0 %v567
  %692 = vmatprep.subr.mxu0 0.0
  %693 = vmatpush1.msra.mxu0 %v568
  %694 = vmatprep.subr.mxu0 0.0
  %695 = vmatpush1.msra.mxu0 %v569
  %696 = vmatprep.subr.mxu0 0.0
  %697 = vmatpush1.msra.mxu0 %v570
  %698 = vmatprep.subr.mxu0 0.0
  %699 = vmatpush1.msra.mxu0 %v571
  %700 = vmatprep.subr.mxu0 0.0
  %701 = vmatpush1.msra.mxu0 %v572
  %702 = vmatprep.subr.mxu0 0.0
  %703 = vmatpush1.msra.mxu0 %v573
  %704 = vmatprep.subr.mxu0 0.0
  %705 = vmatpush1.msra.mxu0 %v574
  %706 = vmatprep.subr.mxu0 0.0
  %707 = vmatpush1.msra.mxu0 %v575
  %708 = vmatprep.subr.mxu0 0.0
  %709 = vmatpush1.msra.mxu0 %v576
  %710 = vmatprep.subr.mxu0 0.0
  %711 = vmatpush1.msra.mxu0 %v577
  %712 = vmatprep.subr.mxu0 0.0
  %713 = vmatpush1.msra.mxu0 %v578
  %714 = vmatprep.mubr.f32.mxu0 %v536
  %715 = vmatmul.mubr.f32.gmra.mrb[0].mxu0 %v535
  %v716 = vpop.f32.mrb[0].mxu0
  %v717 = vadd.f32 %v648, %v716
  %v718 = vpop.f32.mrb[0].mxu0
  %719 = vmatprep.mubr.f32.mxu0 %v542
  %720 = vmatmul.mubr.f32.gmra.mrb[0].mxu0 %v541
  %v721 = vpop.f32.mrb[0].mxu0
  %v722 = vadd.f32 %v648, %v721
  %v723 = vpop.f32.mrb[0].mxu0
  %724 = vdwg.mxu0
  %725 = vmatprep.subr.mxu0 0.0
  %726 = vmatpush1.msra.mxu0 %v579
  %727 = vmatprep.subr.mxu0 0.0
  %728 = vmatpush1.msra.mxu0 %v580
  %729 = vmatprep.subr.mxu0 0.0
  %730 = vmatpush1.msra.mxu0 %v581
  %731 = vmatprep.subr.mxu0 0.0
  %732 = vmatpush1.msra.mxu0 %v582
  %733 = vmatprep.subr.mxu0 0.0
  %734 = vmatpush1.msra.mxu0 %v583
  %735 = vmatprep.subr.mxu0 0.0
  %736 = vmatpush1.msra.mxu0 %v584
  %737 = vmatprep.subr.mxu0 0.0
  %738 = vmatpush1.msra.mxu0 %v585
  %739 = vmatprep.subr.mxu0 0.0
  %740 = vmatpush1.msra.mxu0 %v586
  %741 = vmatprep.subr.mxu0 0.0
  %742 = vmatpush1.msra.mxu0 %v587
  %743 = vmatprep.subr.mxu0 0.0
  %744 = vmatpush1.msra.mxu0 %v588
  %745 = vmatprep.subr.mxu0 0.0
  %746 = vmatpush1.msra.mxu0 %v589
  %747 = vmatprep.subr.mxu0 0.0
  %748 = vmatpush1.msra.mxu0 %v590
  %749 = vmatprep.subr.mxu0 0.0
  %750 = vmatpush1.msra.mxu0 %v591
  %751 = vmatprep.subr.mxu0 0.0
  %752 = vmatpush1.msra.mxu0 %v592
  %753 = vmatprep.subr.mxu0 0.0
  %754 = vmatpush1.msra.mxu0 %v593
  %755 = vmatprep.subr.mxu0 0.0
  %756 = vmatpush1.msra.mxu0 %v594
  %757 = vmatprep.subr.mxu0 0.0
  %758 = vmatpush1.msra.mxu0 %v595
  %759 = vmatprep.subr.mxu0 0.0
  %760 = vmatpush1.msra.mxu0 %v596
  %761 = vmatprep.subr.mxu0 0.0
  %762 = vmatpush1.msra.mxu0 %v597
  %763 = vmatprep.subr.mxu0 0.0
  %764 = vmatpush1.msra.mxu0 %v598
  %765 = vmatprep.subr.mxu0 0.0
  %766 = vmatpush1.msra.mxu0 %v599
  %767 = vmatprep.subr.mxu0 0.0
  %768 = vmatpush1.msra.mxu0 %v600
  %769 = vmatprep.subr.mxu0 0.0
  %770 = vmatpush1.msra.mxu0 %v601
  %771 = vmatprep.subr.mxu0 0.0
  %772 = vmatpush1.msra.mxu0 %v602
  %773 = vmatprep.subr.mxu0 0.0
  %774 = vmatpush1.msra.mxu0 %v603
  %775 = vmatprep.subr.mxu0 0.0
  %776 = vmatpush1.msra.mxu0 %v604
  %777 = vmatprep.subr.mxu0 0.0
  %778 = vmatpush1.msra.mxu0 %v605
  %779 = vmatprep.subr.mxu0 0.0
  %780 = vmatpush1.msra.mxu0 %v606
  %781 = vmatprep.subr.mxu0 0.0
  %782 = vmatpush1.msra.mxu0 %v607
  %783 = vmatprep.subr.mxu0 0.0
  %784 = vmatpush1.msra.mxu0 %v608
  %785 = vmatprep.subr.mxu0 0.0
  %786 = vmatpush1.msra.mxu0 %v609
  %787 = vmatprep.subr.mxu0 0.0
  %788 = vmatpush1.msra.mxu0 %v610
  %789 = vmatprep.mubr.f32.mxu0 %v538
  %790 = vmatmul.mubr.f32.gmra.mrb[0].mxu0 %v537
  %v791 = vpop.f32.mrb[0].mxu0
  %v792 = vadd.f32 %v717, %v791
  %v793 = vpop.f32.mrb[0].mxu0
  %794 = vmatprep.mubr.f32.mxu0 %v544
  %795 = vmatmul.mubr.f32.gmra.mrb[0].mxu0 %v543
  %v796 = vpop.f32.mrb[0].mxu0
  %v797 = vadd.f32 %v722, %v796
  %v798 = vpop.f32.mrb[0].mxu0
  %799 = vdwg.mxu0
  %800 = vmatprep.subr.mxu0 0.0
  %801 = vmatpush1.msra.mxu0 %v611
  %802 = vmatprep.subr.mxu0 0.0
  %803 = vmatpush1.msra.mxu0 %v612
  %804 = vmatprep.subr.mxu0 0.0
  %805 = vmatpush1.msra.mxu0 %v613
  %806 = vmatprep.subr.mxu0 0.0
  %807 = vmatpush1.msra.mxu0 %v614
  %808 = vmatprep.subr.mxu0 0.0
  %809 = vmatpush1.msra.mxu0 %v615
  %810 = vmatprep.subr.mxu0 0.0
  %811 = vmatpush1.msra.mxu0 %v616
  %812 = vmatprep.subr.mxu0 0.0
  %813 = vmatpush1.msra.mxu0 %v617
  %814 = vmatprep.subr.mxu0 0.0
  %815 = vmatpush1.msra.mxu0 %v618
  %816 = vmatprep.subr.mxu0 0.0
  %817 = vmatpush1.msra.mxu0 %v619
  %818 = vmatprep.subr.mxu0 0.0
  %819 = vmatpush1.msra.mxu0 %v620
  %820 = vmatprep.subr.mxu0 0.0
  %821 = vmatpush1.msra.mxu0 %v621
  %822 = vmatprep.subr.mxu0 0.0
  %823 = vmatpush1.msra.mxu0 %v622
  %824 = vmatprep.subr.mxu0 0.0
  %825 = vmatpush1.msra.mxu0 %v623
  %826 = vmatprep.subr.mxu0 0.0
  %827 = vmatpush1.msra.mxu0 %v624
  %828 = vmatprep.subr.mxu0 0.0
  %829 = vmatpush1.msra.mxu0 %v625
  %830 = vmatprep.subr.mxu0 0.0
  %831 = vmatpush1.msra.mxu0 %v626
  %832 = vmatprep.subr.mxu0 0.0
  %833 = vmatpush1.msra.mxu0 %v627
  %834 = vmatprep.subr.mxu0 0.0
  %835 = vmatpush1.msra.mxu0 %v628
  %836 = vmatprep.subr.mxu0 0.0
  %837 = vmatpush1.msra.mxu0 %v629
  %838 = vmatprep.subr.mxu0 0.0
  %839 = vmatpush1.msra.mxu0 %v630
  %840 = vmatprep.subr.mxu0 0.0
  %841 = vmatpush1.msra.mxu0 %v631
  %842 = vmatprep.subr.mxu0 0.0
  %843 = vmatpush1.msra.mxu0 %v632
  %844 = vmatprep.subr.mxu0 0.0
  %845 = vmatpush1.msra.mxu0 %v633
  %846 = vmatprep.subr.mxu0 0.0
  %847 = vmatpush1.msra.mxu0 %v634
  %848 = vmatprep.subr.mxu0 0.0
  %849 = vmatpush1.msra.mxu0 %v635
  %850 = vmatprep.subr.mxu0 0.0
  %851 = vmatpush1.msra.mxu0 %v636
  %852 = vmatprep.subr.mxu0 0.0
  %853 = vmatpush1.msra.mxu0 %v637
  %854 = vmatprep.subr.mxu0 0.0
  %855 = vmatpush1.msra.mxu0 %v638
  %856 = vmatprep.subr.mxu0 0.0
  %857 = vmatpush1.msra.mxu0 %v639
  %858 = vmatprep.subr.mxu0 0.0
  %859 = vmatpush1.msra.mxu0 %v640
  %860 = vmatprep.subr.mxu0 0.0
  %861 = vmatpush1.msra.mxu0 %v641
  %862 = vmatprep.subr.mxu0 0.0
  %863 = vmatpush1.msra.mxu0 %v642
  %864 = vmatprep.mubr.f32.mxu0 %v540
  %865 = vmatmul.mubr.f32.gmra.mrb[0].mxu0 %v539
  %v866 = vpop.f32.mrb[0].mxu0
  %v867 = vadd.f32 %v792, %v866
  %v868 = vpop.f32.mrb[0].mxu0
  %869 = vmatprep.mubr.f32.mxu0 %v546
  %870 = vmatmul.mubr.f32.gmra.mrb[0].mxu0 %v545
  %v871 = vpop.f32.mrb[0].mxu0
  %v872 = vadd.f32 %v797, %v871
  %v873 = vpop.f32.mrb[0].mxu0
  %874 = vdwg.mxu0
  %875 = vst [vmem:[%s4] sm:$0xff] %v867
  %876 = vst [vmem:[%s4 + $0x8] sm:$0xff] %v872
  // Predicated region
  $region18: #{agcn_forward.1} parent=0 // pred_check
    _
  $region19: #{agcn_forward.1} parent=0 // pred_check_branch
    %878 = sbr.rel (0) target = $region21
  $region20: #{agcn_forward.1} parent=0 // pred_region
    _
  $region21: #{agcn_forward.1} parent=0 // pred_fallthru
    _
  // Predicated region
  $region22: #{agcn_forward.1} parent=0 // pred_check
    _
  $region23: #{agcn_forward.1} parent=0 // pred_check_branch
    %880 = sbr.rel (0) target = $region25
  $region24: #{agcn_forward.1} parent=0 // pred_region
    _
  $region25: #{agcn_forward.1} parent=0 // pred_fallthru
    _

</llo_original>
